<compile_context>
chip_gen: v6e
topology: v6e:2x2x1
jax: 0.10.0
libtpu: 0.0.40
codegen_flags: <defaults>
</compile_context>

<pallas_src>
import functools

import jax
import jax.numpy as jnp
from jax.experimental import pallas as pl
from jax.experimental.pallas import tpu as pltpu


def mlp_kernel(x_ref, w1_ref, b1_ref, w2_ref, b2_ref, o_ref):
    # Linear1 + ReLU: bf16 operands, f32 accumulation on the MXU.
    h = jnp.dot(x_ref[...], w1_ref[...], preferred_element_type=jnp.float32)
    h = jnp.maximum(h + b1_ref[...], 0.0)          # b1 is f32; elementwise stays f32
    # Linear2: re-feed the MXU in bf16, keep f32 accumulation.
    y = jnp.dot(h.astype(w2_ref.dtype), w2_ref[...],
                preferred_element_type=jnp.float32)
    y = y + b2_ref[...]                            # b2 is f32
    # TODO(synk): nn.Dropout in training mode would mask & scale by 1/(1-p) here
    #             (pltpu.prng_seed + pltpu.prng_random_bits); eval mode == identity.
    o_ref[...] = y.astype(o_ref.dtype)


def _round_up(n, m):
    return pl.cdiv(n, m) * m


@functools.partial(jax.jit, static_argnames=("tm",))
def mlp_forward(x, w1, b1, w2, b2, *, tm=1024):
    B, D_in = x.shape
    H = w1.shape[1]
    D_out = w2.shape[1]

    # Row tile: multiple of 16 (bf16 sublane packing), never larger than needed to
    # give the "parallel" grid axis at least 2 steps (feeds both v7x TensorCores,
    # harmless on v5e/v6e). Small batches collapse to a single small tile.
    tm_eff = int(min(tm, _round_up(pl.cdiv(B, 2), 16)))
    grid = (pl.cdiv(B, tm_eff),)   # partial last block handled by Pallas (masked vst)

    itemsize = jnp.dtype(x.dtype).itemsize
    flops = 2 * B * (D_in * H + H * D_out)
    bytes_accessed = (
        B * D_in * itemsize                           # x
        + w1.size * jnp.dtype(w1.dtype).itemsize      # W1
        + b1.size * jnp.dtype(b1.dtype).itemsize      # b1
        + w2.size * jnp.dtype(w2.dtype).itemsize      # W2
        + b2.size * jnp.dtype(b2.dtype).itemsize      # b2
        + B * D_out * itemsize                        # out
    )

    # Only raise the scoped VMEM limit when a big tm sweep would actually need it
    # (double-buffered x/out tiles + f32 intermediates); default tm=1024 fits easily.
    compiler_kwargs = dict(dimension_semantics=("parallel",))
    est_vmem = 2 * tm_eff * (D_in + D_out) * itemsize + 2 * tm_eff * max(H, D_out) * 4
    if est_vmem > 12 * 1024 * 1024:
        compiler_kwargs["vmem_limit_bytes"] = int(
            min(_round_up(2 * est_vmem, 1 << 20), 64 * 1024 * 1024))

    out = pl.pallas_call(
        mlp_kernel,
        out_shape=jax.ShapeDtypeStruct((B, D_out), x.dtype),
        grid_spec=pltpu.PrefetchScalarGridSpec(
            num_scalar_prefetch=0,
            grid=grid,
            in_specs=[
                pl.BlockSpec((tm_eff, D_in), lambda i: (i, 0)),   # x tile
                pl.BlockSpec((D_in, H),      lambda i: (0, 0)),   # W1 (resident)
                pl.BlockSpec((1, H),         lambda i: (0, 0)),   # b1 (f32, resident)
                pl.BlockSpec((H, D_out),     lambda i: (0, 0)),   # W2 (resident)
                pl.BlockSpec((1, D_out),     lambda i: (0, 0)),   # b2 (f32, resident)
            ],
            out_specs=pl.BlockSpec((tm_eff, D_out), lambda i: (i, 0)),
        ),
        compiler_params=pltpu.CompilerParams(**compiler_kwargs),
        cost_estimate=pl.CostEstimate(
            flops=flops, transcendentals=0, bytes_accessed=bytes_accessed),
    )(x, w1, b1, w2, b2)

    return out


def init_params(key, units=(512, 256, 512), dtype=jnp.bfloat16):
    """Deterministic init mimicking nn.Linear's U(-1/sqrt(fan_in), 1/sqrt(fan_in))."""
    d0, d1, d2 = units
    k1, k2, k3, k4 = jax.random.split(key, 4)
    bound1 = 1.0 / (d0 ** 0.5)
    bound2 = 1.0 / (d1 ** 0.5)
    # Weights stored as (in, out) == PyTorch weight.T; biases kept in f32.
    w1 = jax.random.uniform(k1, (d0, d1), jnp.float32, -bound1, bound1).astype(dtype)
    b1 = jax.random.uniform(k2, (1, d1), jnp.float32, -bound1, bound1)
    w2 = jax.random.uniform(k3, (d1, d2), jnp.float32, -bound2, bound2).astype(dtype)
    b2 = jax.random.uniform(k4, (1, d2), jnp.float32, -bound2, bound2)
    return w1, b1, w2, b2


def mlp_reference(x, w1, b1, w2, b2):
    """Pure-JAX reference mirroring the kernel's bf16-operand / f32-accum path."""
    xf, w1f, w2f = (a.astype(jnp.float32) for a in (x, w1, w2))
    h = jnp.maximum(xf @ w1f + b1, 0.0)
    h = h.astype(jnp.bfloat16).astype(jnp.float32)  # kernel re-feeds MXU in bf16
    return (h @ w2f + b2).astype(x.dtype)


if __name__ == "__main__":
    units = (512, 256, 512)
    key = jax.random.PRNGKey(0)
    kx, kp = jax.random.split(key)
    w1, b1, w2, b2 = init_params(kp, units)

    # batch=48 -> tm_eff=32, grid=(2,): exercises the 2-step parallel axis and the
    # partial (masked) last block; batch=8 exercises the tiny single-tile path.
    for batch in (48, 8):
        x = jax.random.normal(kx, (batch, units[0]), jnp.float32).astype(jnp.bfloat16)
        out = jax.block_until_ready(mlp_forward(x, w1, b1, w2, b2))
        ref = mlp_reference(x, w1, b1, w2, b2)
        assert out.shape == (batch, units[-1])
        assert jnp.allclose(out.astype(jnp.float32), ref.astype(jnp.float32),
                            atol=5e-2, rtol=5e-2), f"mismatch at batch={batch}"

    print("KERNEL_OK")
</pallas_src>

<mosaic_0001>
module attributes {stable_mosaic.version = 11 : i64} {
  func.func @mlp_kernel(%arg0: i32, %arg1: memref<32x512xbf16, #tpu.memory_space<vmem>>, %arg2: memref<512x256xbf16, #tpu.memory_space<vmem>>, %arg3: memref<1x256xf32, #tpu.memory_space<vmem>>, %arg4: memref<256x512xbf16, #tpu.memory_space<vmem>>, %arg5: memref<1x512xf32, #tpu.memory_space<vmem>>, %arg6: memref<32x512xbf16, #tpu.memory_space<vmem>>) attributes {dimension_semantics = [#tpu.dimension_semantics<parallel>], iteration_bounds = array<i64: 2>, scalar_prefetch = 0 : i64, scratch_operands = 0 : i64, tpu.core_type = #tpu.core_type<tc>, window_params = [{transform_indices = @transform_0, window_bounds = array<i64: 32, 512>}, {pipeline_mode = #tpu.pipeline_mode<synchronous>, transform_indices = @transform_1, window_bounds = array<i64: 512, 256>}, {pipeline_mode = #tpu.pipeline_mode<synchronous>, transform_indices = @transform_2, window_bounds = array<i64: 1, 256>}, {pipeline_mode = #tpu.pipeline_mode<synchronous>, transform_indices = @transform_3, window_bounds = array<i64: 256, 512>}, {pipeline_mode = #tpu.pipeline_mode<synchronous>, transform_indices = @transform_4, window_bounds = array<i64: 1, 512>}, {transform_indices = @transform_5, window_bounds = array<i64: 32, 512>}]} {
    %c0 = arith.constant 0 : index
    %c0_0 = arith.constant 0 : index
    %0 = vector.load %arg1[%c0, %c0_0] : memref<32x512xbf16, #tpu.memory_space<vmem>>, vector<32x512xbf16>
    %c0_1 = arith.constant 0 : index
    %c0_2 = arith.constant 0 : index
    %1 = vector.load %arg2[%c0_1, %c0_2] : memref<512x256xbf16, #tpu.memory_space<vmem>>, vector<512x256xbf16>
    %cst = arith.constant dense<0.000000e+00> : vector<32x256xf32>
    %2 = tpu.matmul %0, %1, %cst {dimension_numbers = #tpu.dot_dimension_numbers<[1], [0], [0], [1], [0, 0, 1, 1], [], []>} : vector<32x512xbf16>, vector<512x256xbf16>, vector<32x256xf32> -> vector<32x256xf32>
    %c0_3 = arith.constant 0 : index
    %c0_4 = arith.constant 0 : index
    %3 = vector.load %arg3[%c0_3, %c0_4] : memref<1x256xf32, #tpu.memory_space<vmem>>, vector<1x256xf32>
    %4 = vector.broadcast %3 : vector<1x256xf32> to vector<32x256xf32>
    %5 = arith.addf %2, %4 : vector<32x256xf32>
    %cst_5 = arith.constant 0.000000e+00 : f32
    %6 = vector.broadcast %cst_5 : f32 to vector<32x256xf32>
    %7 = arith.maximumf %5, %6 : vector<32x256xf32>
    %8 = arith.truncf %7 : vector<32x256xf32> to vector<32x256xbf16>
    %c0_6 = arith.constant 0 : index
    %c0_7 = arith.constant 0 : index
    %9 = vector.load %arg4[%c0_6, %c0_7] : memref<256x512xbf16, #tpu.memory_space<vmem>>, vector<256x512xbf16>
    %cst_8 = arith.constant dense<0.000000e+00> : vector<32x512xf32>
    %10 = tpu.matmul %8, %9, %cst_8 {dimension_numbers = #tpu.dot_dimension_numbers<[1], [0], [0], [1], [0, 0, 1, 1], [], []>} : vector<32x256xbf16>, vector<256x512xbf16>, vector<32x512xf32> -> vector<32x512xf32>
    %c0_9 = arith.constant 0 : index
    %c0_10 = arith.constant 0 : index
    %11 = vector.load %arg5[%c0_9, %c0_10] : memref<1x512xf32, #tpu.memory_space<vmem>>, vector<1x512xf32>
    %12 = vector.broadcast %11 : vector<1x512xf32> to vector<32x512xf32>
    %13 = arith.addf %10, %12 : vector<32x512xf32>
    %14 = arith.truncf %13 : vector<32x512xf32> to vector<32x512xbf16>
    %c0_11 = arith.constant 0 : index
    %c0_12 = arith.constant 0 : index
    %15 = vector.load %arg6[%c0_11, %c0_12] : memref<32x512xbf16, #tpu.memory_space<vmem>>, vector<32x512xbf16>
    tpu.vector_store %arg6[%c0_11, %c0_12], %14 {strides = array<i32>} : memref<32x512xbf16, #tpu.memory_space<vmem>>, vector<32x512xbf16>,
    return
  }
  func.func @transform_0(%arg0: i32) -> (i32, i32) {
    %c0_i32 = arith.constant 0 : i32
    %c0_i32_0 = arith.constant 0 : i32
    return %arg0, %c0_i32 : i32, i32
  }
  func.func @transform_1(%arg0: i32) -> (i32, i32) {
    %c0_i32 = arith.constant 0 : i32
    %c0_i32_0 = arith.constant 0 : i32
    %c0_i32_1 = arith.constant 0 : i32
    return %c0_i32, %c0_i32_0 : i32, i32
  }
  func.func @transform_2(%arg0: i32) -> (i32, i32) {
    %c0_i32 = arith.constant 0 : i32
    %c0_i32_0 = arith.constant 0 : i32
    %c0_i32_1 = arith.constant 0 : i32
    return %c0_i32, %c0_i32_0 : i32, i32
  }
  func.func @transform_3(%arg0: i32) -> (i32, i32) {
    %c0_i32 = arith.constant 0 : i32
    %c0_i32_0 = arith.constant 0 : i32
    %c0_i32_1 = arith.constant 0 : i32
    return %c0_i32, %c0_i32_0 : i32, i32
  }
  func.func @transform_4(%arg0: i32) -> (i32, i32) {
    %c0_i32 = arith.constant 0 : i32
    %c0_i32_0 = arith.constant 0 : i32
    %c0_i32_1 = arith.constant 0 : i32
    return %c0_i32, %c0_i32_0 : i32, i32
  }
  func.func @transform_5(%arg0: i32) -> (i32, i32) {
    %c0_i32 = arith.constant 0 : i32
    %c0_i32_0 = arith.constant 0 : i32
    return %arg0, %c0_i32 : i32, i32
  }
}

</mosaic_0001>

<llo_original>
// kernel: mlp_forward.1
$region0: #{mlp_forward.1}
  #allocation0 [shape = 'u32[]', space=smem, size = 0x4, offset = 0x4, fixed_abs, tag = 'smem constant byte address 0x4 - core index']
  #allocation1 [shape = 'u32[144,128]{1,0:T(1,128)}', space=vmem, size = 0x12000, scoped, tag = 'internal scratch']
  %s0 = inlined_call_operand.hbm [shape: bf16[48,512], index: 0, kind: input, shape index: {}]
  %s1 = inlined_call_operand.hbm [shape: bf16[512,256], index: 1, kind: input, shape index: {}]
  %s2 = inlined_call_operand.vmem [shape: f32[1,256], index: 2, kind: input, shape index: {}]
  %s3 = inlined_call_operand.hbm [shape: bf16[256,512], index: 3, kind: input, shape index: {}]
  %s4 = inlined_call_operand.vmem [shape: f32[1,512], index: 4, kind: input, shape index: {}]
  %s5 = inlined_call_operand.hbm [shape: bf16[48,512], index: 5, kind: output, shape index: {}]
  %s6 = sld [smem:[#allocation0]]
  $region65: #{mlp_forward.1} parent=0
    _
  %s8 = ssub.s32 1, %s6
  %s9 = scalar_select 0, %s8, %s6
  $region1: #{mlp_forward.1} parent=0
    #allocation2 [shape = 'u8[65536]{0}', space=vmem, size = 0x10000, scoped, tag = 'input window, operand 0']
    #allocation3 [shape = 's32[2]{0}', space=sflag, size = 0x8, scoped, tag = 'scoped memory for mlp_forward.1']
    #allocation4 [shape = 's32[2]{0}', space=sflag, size = 0x8, scoped, tag = 'scoped memory for mlp_forward.1']
    #allocation5 [shape = 'u8[262144]{0}', space=vmem, size = 0x40000, scoped, tag = 'input window, operand 1, single buffered']
    #allocation6 [shape = 's32[1]{0}', space=sflag, size = 0x4, scoped, tag = 'scoped memory for mlp_forward.1']
    #allocation7 [shape = 'u8[262144]{0}', space=vmem, size = 0x40000, scoped, tag = 'input window, operand 3, single buffered']
    #allocation8 [shape = 'u8[65536]{0}', space=vmem, size = 0x10000, scoped, tag = 'output window, operand 0']
    %10 = vsyncpa [#allocation3], 0
    %s11 = scalar_lea.sflag [#allocation3], 1
    %12 = vsyncpa %s11, 0
    %13 = vsyncpa [#allocation6], 0
    %14 = vsyncpa [#allocation4], 0
    %s15 = scalar_lea.sflag [#allocation4], 1
    %16 = vsyncpa %s15, 0
    loop: start=0, step=1, limit=4
    $region2: #{mlp_forward.1} parent=1 // loop_pre_header
      _
    $region3: #{mlp_forward.1} parent=1 // loop_header
      %s18 = sphi 0, %s22
      %p19 = scmp.ge.s32.totalorder %s18, 4
      %s28 = sphi 0, %s30
      %s31 = sphi 0, %s28
      %s32 = sphi 0, %s31
      %s48 = sphi 0, %s32
      %s52 = sphi 0, %s52
      %s54 = sphi 0, %s52
      %s55 = sphi 0, %s54
      %s69 = sphi 0, %s55
      %s73 = sphi 0, %s73
      %s75 = sphi 0, %s73
      %s76 = sphi 0, %s75
      %s90 = sphi 0, %s76
      %s94 = sphi 0, %s94
      %s96 = sphi 0, %s94
      %s97 = sphi 0, %s96
      %s111 = sphi 0, %s97
      %s115 = sphi 0, %s115
      %s117 = sphi 0, %s115
      %s118 = sphi 0, %s117
      %s132 = sphi 0, %s118
      %s138 = sphi 0, %s140
      %s141 = sphi 0, %s138
      %s142 = sphi 0, %s141
      %s158 = sphi 0, %s142
    $region4: #{mlp_forward.1} parent=1 // loop_header_branch
      %21 = sbr.rel (%p19) target = $region8
    $region5: #{mlp_forward.1} parent=1 // loop_body
      %s23 = ssub.s32 %s18, 1
      %s24 = ssub.s32 %s18, 2
      %s25 = sadd.s32 %s18, 1
      %s26 = ssub.s32 %s18, %s25
      %p27 = scmp.eq.s32.totalorder %s26, 0
      %s29 = sadd.s32 %s28, 1
      %s30 = scalar_select %p27, %s28, %s29
      %p33 = pneg %p27
      %p34 = scmp.eq.s32.totalorder %s18, 1
      %p35 = por %p33, %p34
      %p36 = scmp.ne.s32.totalorder %s28, %s31
      %p37 = scmp.eq.s32.totalorder %s18, 0
      %p38 = por %p36, %p37
      %p39 = scmp.ne.s32.totalorder %s28, %s31
      %p40 = scmp.eq.s32.totalorder %s23, 1
      %p41 = por %p39, %p40
      %p42 = scmp.ne.s32.totalorder %s31, %s32
      %p43 = scmp.eq.s32.totalorder %s23, 0
      %p44 = por %p42, %p43
      %p45 = scmp.ne.s32.totalorder %s31, %s32
      %p46 = scmp.eq.s32.totalorder %s24, 1
      %p47 = por %p45, %p46
      %p49 = scmp.ne.s32.totalorder %s32, %s48
      %p50 = scmp.eq.s32.totalorder %s24, 0
      %p51 = por %p49, %p50
      %s53 = sadd.s32 %s52, 1
      %p56 = scmp.eq.s32.totalorder %s18, 1
      %p57 = scmp.ne.s32.totalorder %s52, %s54
      %p58 = scmp.eq.s32.totalorder %s18, 0
      %p59 = por %p57, %p58
      %p60 = scmp.ne.s32.totalorder %s52, %s54
      %p61 = scmp.eq.s32.totalorder %s23, 1
      %p62 = por %p60, %p61
      %p63 = scmp.ne.s32.totalorder %s54, %s55
      %p64 = scmp.eq.s32.totalorder %s23, 0
      %p65 = por %p63, %p64
      %p66 = scmp.ne.s32.totalorder %s54, %s55
      %p67 = scmp.eq.s32.totalorder %s24, 1
      %p68 = por %p66, %p67
      %p70 = scmp.ne.s32.totalorder %s55, %s69
      %p71 = scmp.eq.s32.totalorder %s24, 0
      %p72 = por %p70, %p71
      %s74 = sadd.s32 %s73, 1
      %p77 = scmp.eq.s32.totalorder %s18, 1
      %p78 = scmp.ne.s32.totalorder %s73, %s75
      %p79 = scmp.eq.s32.totalorder %s18, 0
      %p80 = por %p78, %p79
      %p81 = scmp.ne.s32.totalorder %s73, %s75
      %p82 = scmp.eq.s32.totalorder %s23, 1
      %p83 = por %p81, %p82
      %p84 = scmp.ne.s32.totalorder %s75, %s76
      %p85 = scmp.eq.s32.totalorder %s23, 0
      %p86 = por %p84, %p85
      %p87 = scmp.ne.s32.totalorder %s75, %s76
      %p88 = scmp.eq.s32.totalorder %s24, 1
      %p89 = por %p87, %p88
      %p91 = scmp.ne.s32.totalorder %s76, %s90
      %p92 = scmp.eq.s32.totalorder %s24, 0
      %p93 = por %p91, %p92
      %s95 = sadd.s32 %s94, 1
      %p98 = scmp.eq.s32.totalorder %s18, 1
      %p99 = scmp.ne.s32.totalorder %s94, %s96
      %p100 = scmp.eq.s32.totalorder %s18, 0
      %p101 = por %p99, %p100
      %p102 = scmp.ne.s32.totalorder %s94, %s96
      %p103 = scmp.eq.s32.totalorder %s23, 1
      %p104 = por %p102, %p103
      %p105 = scmp.ne.s32.totalorder %s96, %s97
      %p106 = scmp.eq.s32.totalorder %s23, 0
      %p107 = por %p105, %p106
      %p108 = scmp.ne.s32.totalorder %s96, %s97
      %p109 = scmp.eq.s32.totalorder %s24, 1
      %p110 = por %p108, %p109
      %p112 = scmp.ne.s32.totalorder %s97, %s111
      %p113 = scmp.eq.s32.totalorder %s24, 0
      %p114 = por %p112, %p113
      %s116 = sadd.s32 %s115, 1
      %p119 = scmp.eq.s32.totalorder %s18, 1
      %p120 = scmp.ne.s32.totalorder %s115, %s117
      %p121 = scmp.eq.s32.totalorder %s18, 0
      %p122 = por %p120, %p121
      %p123 = scmp.ne.s32.totalorder %s115, %s117
      %p124 = scmp.eq.s32.totalorder %s23, 1
      %p125 = por %p123, %p124
      %p126 = scmp.ne.s32.totalorder %s117, %s118
      %p127 = scmp.eq.s32.totalorder %s23, 0
      %p128 = por %p126, %p127
      %p129 = scmp.ne.s32.totalorder %s117, %s118
      %p130 = scmp.eq.s32.totalorder %s24, 1
      %p131 = por %p129, %p130
      %p133 = scmp.ne.s32.totalorder %s118, %s132
      %p134 = scmp.eq.s32.totalorder %s24, 0
      %p135 = por %p133, %p134
      %s136 = ssub.s32 %s18, %s25
      %p137 = scmp.eq.s32.totalorder %s136, 0
      %s139 = sadd.s32 %s138, 1
      %s140 = scalar_select %p137, %s138, %s139
      %p143 = pneg %p137
      %p144 = scmp.eq.s32.totalorder %s18, 1
      %p145 = por %p143, %p144
      %p146 = scmp.ne.s32.totalorder %s138, %s141
      %p147 = scmp.eq.s32.totalorder %s18, 0
      %p148 = por %p146, %p147
      %p149 = scmp.ne.s32.totalorder %s138, %s141
      %p150 = scmp.eq.s32.totalorder %s23, 1
      %p151 = por %p149, %p150
      %p152 = scmp.ne.s32.totalorder %s141, %s142
      %p153 = scmp.eq.s32.totalorder %s23, 0
      %p154 = por %p152, %p153
      %p155 = scmp.ne.s32.totalorder %s141, %s142
      %p156 = scmp.eq.s32.totalorder %s24, 1
      %p157 = por %p155, %p156
      %p159 = scmp.ne.s32.totalorder %s142, %s158
      %p160 = scmp.eq.s32.totalorder %s24, 0
      %p161 = por %p159, %p160
      %p162 = scmp.le.s32.totalorder 1, %s18
      %p163 = scmp.lt.s32.totalorder %s18, 3
      %p164 = pnand %p162, %p163
      %p165 = pneg %p164
      // Predicated region
      $region9: #{mlp_forward.1} parent=5 // pred_check
        _
      $region10: #{mlp_forward.1} parent=5 // pred_check_branch
        %167 = sbr.rel (%p164) target = $region12
      $region11: #{mlp_forward.1} parent=5 // pred_region
        %s168 = ssub.s32 %s18, 1
        // Predicated region
        $region13: #{mlp_forward.1} parent=11 // pred_check
          %p169 = pneg %p65
        $region14: #{mlp_forward.1} parent=11 // pred_check_branch
          %171 = sbr.rel (%p169) target = $region16
        $region15: #{mlp_forward.1} parent=11 // pred_region
          %s173 = ssub.s32 8192, 8192
          %174 = vsyncadd [#allocation6], %s173
          %s175 = sshll.u32 [#allocation5], 4
          %s176 = int_to_ptr.vmem [resolvable:$true] %s175
          %181 = dma.hbm_to_vmem [thread:$0]  %s1, 8192, %s176, [#allocation6], 128, 128, 8
        $region16: #{mlp_forward.1} parent=11 // pred_fallthru
          _
        // Predicated region
        $region17: #{mlp_forward.1} parent=11 // pred_check
          %p182 = pneg %p86
        $region18: #{mlp_forward.1} parent=11 // pred_check_branch
          %184 = sbr.rel (%p182) target = $region20
        $region19: #{mlp_forward.1} parent=11 // pred_region
          _
        $region20: #{mlp_forward.1} parent=11 // pred_fallthru
          _
        // Predicated region
        $region21: #{mlp_forward.1} parent=11 // pred_check
          %p185 = pneg %p107
        $region22: #{mlp_forward.1} parent=11 // pred_check_branch
          %187 = sbr.rel (%p185) target = $region24
        $region23: #{mlp_forward.1} parent=11 // pred_region
          %s189 = ssub.s32 8192, 8192
          %190 = vsyncadd [#allocation6], %s189
          %s191 = sshll.u32 [#allocation7], 4
          %s192 = int_to_ptr.vmem [resolvable:$true] %s191
          %197 = dma.hbm_to_vmem [thread:$0]  %s3, 8192, %s192, [#allocation6], 256, 256, 16
        $region24: #{mlp_forward.1} parent=11 // pred_fallthru
          _
        // Predicated region
        $region25: #{mlp_forward.1} parent=11 // pred_check
          %p198 = pneg %p128
        $region26: #{mlp_forward.1} parent=11 // pred_check_branch
          %200 = sbr.rel (%p198) target = $region28
        $region27: #{mlp_forward.1} parent=11 // pred_region
          _
        $region28: #{mlp_forward.1} parent=11 // pred_fallthru
          _
      $region12: #{mlp_forward.1} parent=5 // pred_fallthru
        _
      %p201 = scmp.lt.s32.totalorder %s18, 2
      // Predicated region
      $region29: #{mlp_forward.1} parent=5 // pred_check
        %p202 = pneg %p201
      $region30: #{mlp_forward.1} parent=5 // pred_check_branch
        %204 = sbr.rel (%p202) target = $region32
      $region31: #{mlp_forward.1} parent=5 // pred_region
        // Predicated region
        $region33: #{mlp_forward.1} parent=31 // pred_check
          %p205 = pneg %p38
        $region34: #{mlp_forward.1} parent=31 // pred_check_branch
          %207 = sbr.rel (%p205) target = $region36
        $region35: #{mlp_forward.1} parent=31 // pred_region
          %s208 = sand.u32 %s28, 1
          %s209 = scalar_lea.sflag [#allocation3], %s208
          %s210 = sand.u32 %s28, 1
          %s211 = smul.addr %s210, 64
          %s212 = scalar_lea.vmem [#allocation2], %s211
          %s213 = smul.u32 4, %s18
          %s214 = ssub.s32 6, %s213
          %p215 = scmp.lt.s32.totalorder %s214, 4
          %s216 = scalar_select %p215, %s214, 4
          %s217 = smul.u32 64, %s216
          %s218 = smul.u32 %s217, 4
          %s220 = ssub.s32 1024, %s218
          %221 = vsyncadd %s209, %s220
          %p222 = scmp.ne.s32.totalorder 0, %s218
          %s223 = smul.addr %s213, 4
          %s224 = smul.addr %s223, 64
          %s225 = scalar_lea.hbm %s0, %s224
          %s226 = smul.u32 16, %s216
          %s227 = sshll.u32 %s212, 4
          %s228 = int_to_ptr.vmem [resolvable:$true] %s227
          %s229 = sshll.u32 %s226, 4
          %233 = dma.hbm_to_vmem [thread:$0]  (%p222), %s225, %s229, %s228, %s209, 256, 256, 16
        $region36: #{mlp_forward.1} parent=31 // pred_fallthru
          _
      $region32: #{mlp_forward.1} parent=5 // pred_fallthru
        _
      %p234 = scmp.le.s32.totalorder 1, %s18
      %p235 = scmp.lt.s32.totalorder %s18, 3
      %p236 = pnand %p234, %p235
      %p237 = pneg %p236
      // Predicated region
      $region37: #{mlp_forward.1} parent=5 // pred_check
        _
      $region38: #{mlp_forward.1} parent=5 // pred_check_branch
        %239 = sbr.rel (%p236) target = $region40
      $region39: #{mlp_forward.1} parent=5 // pred_region
        %s240 = ssub.s32 %s18, 1
        %s241 = sand.u32 %s31, 1
        %s242 = scalar_lea.sflag [#allocation3], %s241
        %s243 = sand.u32 %s31, 1
        %s244 = smul.addr %s243, 64
        %s245 = scalar_lea.vmem [#allocation2], %s244
        // Predicated region
        $region41: #{mlp_forward.1} parent=39 // pred_check
          %p246 = pneg %p44
        $region42: #{mlp_forward.1} parent=39 // pred_check_branch
          %248 = sbr.rel (%p246) target = $region44
        $region43: #{mlp_forward.1} parent=39 // pred_region
          %249 = dma.done %s242, 1024
        $region44: #{mlp_forward.1} parent=39 // pred_fallthru
          _
        // Predicated region
        $region45: #{mlp_forward.1} parent=39 // pred_check
          %p250 = pneg %p65
        $region46: #{mlp_forward.1} parent=39 // pred_check_branch
          %252 = sbr.rel (%p250) target = $region48
        $region47: #{mlp_forward.1} parent=39 // pred_region
          %253 = dma.done [#allocation6], 8192
        $region48: #{mlp_forward.1} parent=39 // pred_fallthru
          _
        // Predicated region
        $region49: #{mlp_forward.1} parent=39 // pred_check
          %p254 = pneg %p107
        $region50: #{mlp_forward.1} parent=39 // pred_check_branch
          %256 = sbr.rel (%p254) target = $region52
        $region51: #{mlp_forward.1} parent=39 // pred_region
          %257 = dma.done [#allocation6], 8192
        $region52: #{mlp_forward.1} parent=39 // pred_fallthru
          _
        %s258 = sand.u32 %s31, 1
        %s259 = scalar_lea.sflag [#allocation3], %s258
        %s260 = sand.u32 %s31, 1
        %s261 = smul.addr %s260, 64
        %s262 = scalar_lea.vmem [#allocation2], %s261
        %p263 = pneg %p44
        %p264 = pneg %p41
        %p265 = pneg %p65
        %p266 = pneg %p62
        %p267 = pneg %p86
        %p268 = pneg %p83
        %p269 = pneg %p107
        %p270 = pneg %p104
        %p271 = pneg %p128
        %p272 = pneg %p125
        %p273 = pneg %p154
        %p274 = pneg %p151
        %s275 = sand.u32 %s141, 1
        %s276 = scalar_lea.sflag [#allocation4], %s275
        %s277 = sand.u32 %s141, 1
        %s278 = smul.addr %s277, 64
        %s279 = scalar_lea.vmem [#allocation8], %s278
        %s280 = smul.u32 4, %s23
        %s281 = ssub.s32 6, %s280
        %p282 = scmp.lt.s32.totalorder %s281, 4
        %s283 = scalar_select %p282, %s281, 4
        %s284 = smul.u32 64, %s283
        %s285 = smul.u32 %s284, 4
        %s286 = smul.u32 4, %s23
        %s287 = ssub.s32 6, %s286
        %p288 = scmp.lt.s32.totalorder %s287, 4
        %s289 = scalar_select %p288, %s287, 4
        %s290 = smul.u32 64, %s289
        %s291 = smul.u32 %s290, 4
        %v292 = vld [vmem:[%s245] sm:$0xff]
        %v293 = vld [vmem:[%s245 + $0x8] sm:$0xff]
        %v294 = vld [vmem:[%s245 + $0x10] sm:$0xff]
        %v295 = vld [vmem:[%s245 + $0x18] sm:$0xff]
        %v296 = vld [vmem:[%s245 + $0x20] sm:$0xff]
        %v297 = vld [vmem:[%s245 + $0x28] sm:$0xff]
        %v298 = vld [vmem:[%s245 + $0x30] sm:$0xff]
        %v299 = vld [vmem:[%s245 + $0x38] sm:$0xff]
        %v300 = vld [vmem:[#allocation5] sm:$0xff]
        %v301 = vld [vmem:[#allocation5 + $0x8] sm:$0xff]
        %v302 = vld [vmem:[#allocation5 + $0x10] sm:$0xff]
        %v303 = vld [vmem:[#allocation5 + $0x18] sm:$0xff]
        %v304 = vld [vmem:[#allocation5 + $0x20] sm:$0xff]
        %v305 = vld [vmem:[#allocation5 + $0x28] sm:$0xff]
        %v306 = vld [vmem:[#allocation5 + $0x30] sm:$0xff]
        %v307 = vld [vmem:[#allocation5 + $0x38] sm:$0xff]
        %v308 = vld [vmem:[#allocation5 + $0x40] sm:$0xff]
        %v309 = vld [vmem:[#allocation5 + $0x48] sm:$0xff]
        %v310 = vld [vmem:[#allocation5 + $0x50] sm:$0xff]
        %v311 = vld [vmem:[#allocation5 + $0x58] sm:$0xff]
        %v312 = vld [vmem:[#allocation5 + $0x60] sm:$0xff]
        %v313 = vld [vmem:[#allocation5 + $0x68] sm:$0xff]
        %v314 = vld [vmem:[#allocation5 + $0x70] sm:$0xff]
        %v315 = vld [vmem:[#allocation5 + $0x78] sm:$0xff]
        %v316 = vld [vmem:[#allocation5 + $0x80] sm:$0xff]
        %v317 = vld [vmem:[#allocation5 + $0x88] sm:$0xff]
        %v318 = vld [vmem:[#allocation5 + $0x90] sm:$0xff]
        %v319 = vld [vmem:[#allocation5 + $0x98] sm:$0xff]
        %v320 = vld [vmem:[#allocation5 + $0xa0] sm:$0xff]
        %v321 = vld [vmem:[#allocation5 + $0xa8] sm:$0xff]
        %v322 = vld [vmem:[#allocation5 + $0xb0] sm:$0xff]
        %v323 = vld [vmem:[#allocation5 + $0xb8] sm:$0xff]
        %v324 = vld [vmem:[#allocation5 + $0xc0] sm:$0xff]
        %v325 = vld [vmem:[#allocation5 + $0xc8] sm:$0xff]
        %v326 = vld [vmem:[#allocation5 + $0xd0] sm:$0xff]
        %v327 = vld [vmem:[#allocation5 + $0xd8] sm:$0xff]
        %v328 = vld [vmem:[#allocation5 + $0xe0] sm:$0xff]
        %v329 = vld [vmem:[#allocation5 + $0xe8] sm:$0xff]
        %v330 = vld [vmem:[#allocation5 + $0xf0] sm:$0xff]
        %v331 = vld [vmem:[#allocation5 + $0xf8] sm:$0xff]
        %v332 = vld [vmem:[#allocation5 + $0x100] sm:$0xff]
        %v333 = vld [vmem:[#allocation5 + $0x108] sm:$0xff]
        %v334 = vld [vmem:[#allocation5 + $0x110] sm:$0xff]
        %v335 = vld [vmem:[#allocation5 + $0x118] sm:$0xff]
        %v336 = vld [vmem:[#allocation5 + $0x120] sm:$0xff]
        %v337 = vld [vmem:[#allocation5 + $0x128] sm:$0xff]
        %v338 = vld [vmem:[#allocation5 + $0x130] sm:$0xff]
        %v339 = vld [vmem:[#allocation5 + $0x138] sm:$0xff]
        %v340 = vld [vmem:[#allocation5 + $0x140] sm:$0xff]
        %v341 = vld [vmem:[#allocation5 + $0x148] sm:$0xff]
        %v342 = vld [vmem:[#allocation5 + $0x150] sm:$0xff]
        %v343 = vld [vmem:[#allocation5 + $0x158] sm:$0xff]
        %v344 = vld [vmem:[#allocation5 + $0x160] sm:$0xff]
        %v345 = vld [vmem:[#allocation5 + $0x168] sm:$0xff]
        %v346 = vld [vmem:[#allocation5 + $0x170] sm:$0xff]
        %v347 = vld [vmem:[#allocation5 + $0x178] sm:$0xff]
        %v348 = vld [vmem:[#allocation5 + $0x180] sm:$0xff]
        %v349 = vld [vmem:[#allocation5 + $0x188] sm:$0xff]
        %v350 = vld [vmem:[#allocation5 + $0x190] sm:$0xff]
        %v351 = vld [vmem:[#allocation5 + $0x198] sm:$0xff]
        %v352 = vld [vmem:[#allocation5 + $0x1a0] sm:$0xff]
        %v353 = vld [vmem:[#allocation5 + $0x1a8] sm:$0xff]
        %v354 = vld [vmem:[#allocation5 + $0x1b0] sm:$0xff]
        %v355 = vld [vmem:[#allocation5 + $0x1b8] sm:$0xff]
        %v356 = vld [vmem:[#allocation5 + $0x1c0] sm:$0xff]
        %v357 = vld [vmem:[#allocation5 + $0x1c8] sm:$0xff]
        %v358 = vld [vmem:[#allocation5 + $0x1d0] sm:$0xff]
        %v359 = vld [vmem:[#allocation5 + $0x1d8] sm:$0xff]
        %v360 = vld [vmem:[#allocation5 + $0x1e0] sm:$0xff]
        %v361 = vld [vmem:[#allocation5 + $0x1e8] sm:$0xff]
        %v362 = vld [vmem:[#allocation5 + $0x1f0] sm:$0xff]
        %v363 = vld [vmem:[#allocation5 + $0x1f8] sm:$0xff]
        %v364 = vld [vmem:[%s2] sm:$0x3]
        %v366 = vlaneseq
        %v367 = vshrl.u32 %v366, 7
        %v368 = vsub.s32 0, %v367
        %v369 = vrot.slane %v364, %v368
        %v370 = vlaneseq
        %v371 = vshrl.u32 %v370, 7
        %v372 = vsub.s32 1, %v371
        %v373 = vrot.slane %v364, %v372
        %v384 = vunpack.c.l.b16 %v292
        %v385 = vunpack.c.h.b16 %v292
        %v386 = vunpack.c.l.b16 %v293
        %v387 = vunpack.c.h.b16 %v293
        %v388 = vunpack.c.l.b16 %v294
        %v389 = vunpack.c.h.b16 %v294
        %v390 = vunpack.c.l.b16 %v295
        %v391 = vunpack.c.h.b16 %v295
        %v392 = vunpack.c.l.b16 %v296
        %v393 = vunpack.c.h.b16 %v296
        %v394 = vunpack.c.l.b16 %v297
        %v395 = vunpack.c.h.b16 %v297
        %v396 = vunpack.c.l.b16 %v298
        %v397 = vunpack.c.h.b16 %v298
        %v398 = vunpack.c.l.b16 %v299
        %v399 = vunpack.c.h.b16 %v299
        %v400 = vpack.c.b16 %v388, %v384
        %v401 = vpack.c.b16 %v389, %v385
        %v402 = vpack.c.b16 %v390, %v386
        %v403 = vpack.c.b16 %v391, %v387
        %v404 = vpack.c.b16 %v396, %v392
        %v405 = vpack.c.b16 %v397, %v393
        %v406 = vpack.c.b16 %v398, %v394
        %v407 = vpack.c.b16 %v399, %v395
        %v480 = vunpack.c.l.b16 %v300
        %v481 = vunpack.c.h.b16 %v300
        %v482 = vunpack.c.l.b16 %v301
        %v483 = vunpack.c.h.b16 %v301
        %v484 = vunpack.c.l.b16 %v302
        %v485 = vunpack.c.h.b16 %v302
        %v486 = vunpack.c.l.b16 %v303
        %v487 = vunpack.c.h.b16 %v303
        %v488 = vunpack.c.l.b16 %v304
        %v489 = vunpack.c.h.b16 %v304
        %v490 = vunpack.c.l.b16 %v305
        %v491 = vunpack.c.h.b16 %v305
        %v492 = vunpack.c.l.b16 %v306
        %v493 = vunpack.c.h.b16 %v306
        %v494 = vunpack.c.l.b16 %v307
        %v495 = vunpack.c.h.b16 %v307
        %v496 = vunpack.c.l.b16 %v308
        %v497 = vunpack.c.h.b16 %v308
        %v498 = vunpack.c.l.b16 %v309
        %v499 = vunpack.c.h.b16 %v309
        %v500 = vunpack.c.l.b16 %v310
        %v501 = vunpack.c.h.b16 %v310
        %v502 = vunpack.c.l.b16 %v311
        %v503 = vunpack.c.h.b16 %v311
        %v504 = vunpack.c.l.b16 %v312
        %v505 = vunpack.c.h.b16 %v312
        %v506 = vunpack.c.l.b16 %v313
        %v507 = vunpack.c.h.b16 %v313
        %v508 = vunpack.c.l.b16 %v314
        %v509 = vunpack.c.h.b16 %v314
        %v510 = vunpack.c.l.b16 %v315
        %v511 = vunpack.c.h.b16 %v315
        %v512 = vunpack.c.l.b16 %v316
        %v513 = vunpack.c.h.b16 %v316
        %v514 = vunpack.c.l.b16 %v317
        %v515 = vunpack.c.h.b16 %v317
        %v516 = vunpack.c.l.b16 %v318
        %v517 = vunpack.c.h.b16 %v318
        %v518 = vunpack.c.l.b16 %v319
        %v519 = vunpack.c.h.b16 %v319
        %v520 = vunpack.c.l.b16 %v320
        %v521 = vunpack.c.h.b16 %v320
        %v522 = vunpack.c.l.b16 %v321
        %v523 = vunpack.c.h.b16 %v321
        %v524 = vunpack.c.l.b16 %v322
        %v525 = vunpack.c.h.b16 %v322
        %v526 = vunpack.c.l.b16 %v323
        %v527 = vunpack.c.h.b16 %v323
        %v528 = vunpack.c.l.b16 %v324
        %v529 = vunpack.c.h.b16 %v324
        %v530 = vunpack.c.l.b16 %v325
        %v531 = vunpack.c.h.b16 %v325
        %v532 = vunpack.c.l.b16 %v326
        %v533 = vunpack.c.h.b16 %v326
        %v534 = vunpack.c.l.b16 %v327
        %v535 = vunpack.c.h.b16 %v327
        %v536 = vunpack.c.l.b16 %v328
        %v537 = vunpack.c.h.b16 %v328
        %v538 = vunpack.c.l.b16 %v329
        %v539 = vunpack.c.h.b16 %v329
        %v540 = vunpack.c.l.b16 %v330
        %v541 = vunpack.c.h.b16 %v330
        %v542 = vunpack.c.l.b16 %v331
        %v543 = vunpack.c.h.b16 %v331
        %v544 = vunpack.c.l.b16 %v332
        %v545 = vunpack.c.h.b16 %v332
        %v546 = vunpack.c.l.b16 %v333
        %v547 = vunpack.c.h.b16 %v333
        %v548 = vunpack.c.l.b16 %v334
        %v549 = vunpack.c.h.b16 %v334
        %v550 = vunpack.c.l.b16 %v335
        %v551 = vunpack.c.h.b16 %v335
        %v552 = vunpack.c.l.b16 %v336
        %v553 = vunpack.c.h.b16 %v336
        %v554 = vunpack.c.l.b16 %v337
        %v555 = vunpack.c.h.b16 %v337
        %v556 = vunpack.c.l.b16 %v338
        %v557 = vunpack.c.h.b16 %v338
        %v558 = vunpack.c.l.b16 %v339
        %v559 = vunpack.c.h.b16 %v339
        %v560 = vunpack.c.l.b16 %v340
        %v561 = vunpack.c.h.b16 %v340
        %v562 = vunpack.c.l.b16 %v341
        %v563 = vunpack.c.h.b16 %v341
        %v564 = vunpack.c.l.b16 %v342
        %v565 = vunpack.c.h.b16 %v342
        %v566 = vunpack.c.l.b16 %v343
        %v567 = vunpack.c.h.b16 %v343
        %v568 = vunpack.c.l.b16 %v344
        %v569 = vunpack.c.h.b16 %v344
        %v570 = vunpack.c.l.b16 %v345
        %v571 = vunpack.c.h.b16 %v345
        %v572 = vunpack.c.l.b16 %v346
        %v573 = vunpack.c.h.b16 %v346
        %v574 = vunpack.c.l.b16 %v347
        %v575 = vunpack.c.h.b16 %v347
        %v576 = vunpack.c.l.b16 %v348
        %v577 = vunpack.c.h.b16 %v348
        %v578 = vunpack.c.l.b16 %v349
        %v579 = vunpack.c.h.b16 %v349
        %v580 = vunpack.c.l.b16 %v350
        %v581 = vunpack.c.h.b16 %v350
        %v582 = vunpack.c.l.b16 %v351
        %v583 = vunpack.c.h.b16 %v351
        %v584 = vunpack.c.l.b16 %v352
        %v585 = vunpack.c.h.b16 %v352
        %v586 = vunpack.c.l.b16 %v353
        %v587 = vunpack.c.h.b16 %v353
        %v588 = vunpack.c.l.b16 %v354
        %v589 = vunpack.c.h.b16 %v354
        %v590 = vunpack.c.l.b16 %v355
        %v591 = vunpack.c.h.b16 %v355
        %v592 = vunpack.c.l.b16 %v356
        %v593 = vunpack.c.h.b16 %v356
        %v594 = vunpack.c.l.b16 %v357
        %v595 = vunpack.c.h.b16 %v357
        %v596 = vunpack.c.l.b16 %v358
        %v597 = vunpack.c.h.b16 %v358
        %v598 = vunpack.c.l.b16 %v359
        %v599 = vunpack.c.h.b16 %v359
        %v600 = vunpack.c.l.b16 %v360
        %v601 = vunpack.c.h.b16 %v360
        %v602 = vunpack.c.l.b16 %v361
        %v603 = vunpack.c.h.b16 %v361
        %v604 = vunpack.c.l.b16 %v362
        %v605 = vunpack.c.h.b16 %v362
        %v606 = vunpack.c.l.b16 %v363
        %v607 = vunpack.c.h.b16 %v363
        %v608 = vpack.c.b16 %v482, %v480
        %v609 = vpack.c.b16 %v483, %v481
        %v610 = vpack.c.b16 %v486, %v484
        %v611 = vpack.c.b16 %v487, %v485
        %v612 = vpack.c.b16 %v490, %v488
        %v613 = vpack.c.b16 %v491, %v489
        %v614 = vpack.c.b16 %v494, %v492
        %v615 = vpack.c.b16 %v495, %v493
        %v616 = vpack.c.b16 %v498, %v496
        %v617 = vpack.c.b16 %v499, %v497
        %v618 = vpack.c.b16 %v502, %v500
        %v619 = vpack.c.b16 %v503, %v501
        %v620 = vpack.c.b16 %v506, %v504
        %v621 = vpack.c.b16 %v507, %v505
        %v622 = vpack.c.b16 %v510, %v508
        %v623 = vpack.c.b16 %v511, %v509
        %v624 = vpack.c.b16 %v514, %v512
        %v625 = vpack.c.b16 %v515, %v513
        %v626 = vpack.c.b16 %v518, %v516
        %v627 = vpack.c.b16 %v519, %v517
        %v628 = vpack.c.b16 %v522, %v520
        %v629 = vpack.c.b16 %v523, %v521
        %v630 = vpack.c.b16 %v526, %v524
        %v631 = vpack.c.b16 %v527, %v525
        %v632 = vpack.c.b16 %v530, %v528
        %v633 = vpack.c.b16 %v531, %v529
        %v634 = vpack.c.b16 %v534, %v532
        %v635 = vpack.c.b16 %v535, %v533
        %v636 = vpack.c.b16 %v538, %v536
        %v637 = vpack.c.b16 %v539, %v537
        %v638 = vpack.c.b16 %v542, %v540
        %v639 = vpack.c.b16 %v543, %v541
        %v640 = vpack.c.b16 %v546, %v544
        %v641 = vpack.c.b16 %v547, %v545
        %v642 = vpack.c.b16 %v550, %v548
        %v643 = vpack.c.b16 %v551, %v549
        %v644 = vpack.c.b16 %v554, %v552
        %v645 = vpack.c.b16 %v555, %v553
        %v646 = vpack.c.b16 %v558, %v556
        %v647 = vpack.c.b16 %v559, %v557
        %v648 = vpack.c.b16 %v562, %v560
        %v649 = vpack.c.b16 %v563, %v561
        %v650 = vpack.c.b16 %v566, %v564
        %v651 = vpack.c.b16 %v567, %v565
        %v652 = vpack.c.b16 %v570, %v568
        %v653 = vpack.c.b16 %v571, %v569
        %v654 = vpack.c.b16 %v574, %v572
        %v655 = vpack.c.b16 %v575, %v573
        %v656 = vpack.c.b16 %v578, %v576
        %v657 = vpack.c.b16 %v579, %v577
        %v658 = vpack.c.b16 %v582, %v580
        %v659 = vpack.c.b16 %v583, %v581
        %v660 = vpack.c.b16 %v586, %v584
        %v661 = vpack.c.b16 %v587, %v585
        %v662 = vpack.c.b16 %v590, %v588
        %v663 = vpack.c.b16 %v591, %v589
        %v664 = vpack.c.b16 %v594, %v592
        %v665 = vpack.c.b16 %v595, %v593
        %v666 = vpack.c.b16 %v598, %v596
        %v667 = vpack.c.b16 %v599, %v597
        %v668 = vpack.c.b16 %v602, %v600
        %v669 = vpack.c.b16 %v603, %v601
        %v670 = vpack.c.b16 %v606, %v604
        %v671 = vpack.c.b16 %v607, %v605
        %736 = vmatprep.subr.bf16.mxu0 %v623
        %737 = vmatpush1.bf16.msra.mxu0 %v622
        %738 = vmatprep.subr.bf16.mxu0 %v621
        %739 = vmatpush1.bf16.msra.mxu0 %v620
        %740 = vmatprep.subr.bf16.mxu0 %v619
        %741 = vmatpush1.bf16.msra.mxu0 %v618
        %742 = vmatprep.subr.bf16.mxu0 %v617
        %743 = vmatpush1.bf16.msra.mxu0 %v616
        %744 = vmatprep.subr.bf16.mxu0 %v615
        %745 = vmatpush1.bf16.msra.mxu0 %v614
        %746 = vmatprep.subr.bf16.mxu0 %v613
        %747 = vmatpush1.bf16.msra.mxu0 %v612
        %748 = vmatprep.subr.bf16.mxu0 %v611
        %749 = vmatpush1.bf16.msra.mxu0 %v610
        %750 = vmatprep.subr.bf16.mxu0 %v609
        %751 = vmatpush1.bf16.msra.mxu0 %v608
        %752 = vmatprep.subr.bf16.mxu0 %v639
        %753 = vmatpush2.bf16.msra.mxu0 %v638
        %754 = vmatprep.subr.bf16.mxu0 %v637
        %755 = vmatpush2.bf16.msra.mxu0 %v636
        %756 = vmatprep.subr.bf16.mxu0 %v635
        %757 = vmatpush2.bf16.msra.mxu0 %v634
        %758 = vmatprep.subr.bf16.mxu0 %v633
        %759 = vmatpush2.bf16.msra.mxu0 %v632
        %760 = vmatprep.subr.bf16.mxu0 %v631
        %761 = vmatpush2.bf16.msra.mxu0 %v630
        %762 = vmatprep.subr.bf16.mxu0 %v629
        %763 = vmatpush2.bf16.msra.mxu0 %v628
        %764 = vmatprep.subr.bf16.mxu0 %v627
        %765 = vmatpush2.bf16.msra.mxu0 %v626
        %766 = vmatprep.subr.bf16.mxu0 %v625
        %767 = vmatpush2.bf16.msra.mxu0 %v624
        %768 = vmatprep.mubr.bf16.mxu0 %v401
        %769 = vmatmul.mubr.bf16.gmra.mxu0 %v400
        %v770 = vpop.f32.mrf.mxu0
        %v771 = vadd.f32 %v369, %v770
        %v772 = vpop.f32.mrf.mxu0
        %v773 = vadd.f32 %v373, %v772
        %v774 = vpop.f32.mrf.mxu0
        %v775 = vadd.f32 %v369, %v774
        %v776 = vpop.f32.mrf.mxu0
        %v777 = vadd.f32 %v373, %v776
        %778 = vmatprep.mubr.bf16.mxu0 %v405
        %779 = vmatmul.mubr.bf16.gmra.mxu0 %v404
        %v780 = vpop.f32.mrf.mxu0
        %v781 = vadd.f32 %v369, %v780
        %v782 = vpop.f32.mrf.mxu0
        %v783 = vadd.f32 %v373, %v782
        %v784 = vpop.f32.mrf.mxu0
        %v785 = vadd.f32 %v369, %v784
        %v786 = vpop.f32.mrf.mxu0
        %v787 = vadd.f32 %v373, %v786
        %788 = vdwg.mxu0
        %789 = vmatprep.subr.bf16.mxu0 %v655
        %790 = vmatpush1.bf16.msra.mxu0 %v654
        %791 = vmatprep.subr.bf16.mxu0 %v653
        %792 = vmatpush1.bf16.msra.mxu0 %v652
        %793 = vmatprep.subr.bf16.mxu0 %v651
        %794 = vmatpush1.bf16.msra.mxu0 %v650
        %795 = vmatprep.subr.bf16.mxu0 %v649
        %796 = vmatpush1.bf16.msra.mxu0 %v648
        %797 = vmatprep.subr.bf16.mxu0 %v647
        %798 = vmatpush1.bf16.msra.mxu0 %v646
        %799 = vmatprep.subr.bf16.mxu0 %v645
        %800 = vmatpush1.bf16.msra.mxu0 %v644
        %801 = vmatprep.subr.bf16.mxu0 %v643
        %802 = vmatpush1.bf16.msra.mxu0 %v642
        %803 = vmatprep.subr.bf16.mxu0 %v641
        %804 = vmatpush1.bf16.msra.mxu0 %v640
        %805 = vmatprep.subr.bf16.mxu0 %v671
        %806 = vmatpush2.bf16.msra.mxu0 %v670
        %807 = vmatprep.subr.bf16.mxu0 %v669
        %808 = vmatpush2.bf16.msra.mxu0 %v668
        %809 = vmatprep.subr.bf16.mxu0 %v667
        %810 = vmatpush2.bf16.msra.mxu0 %v666
        %811 = vmatprep.subr.bf16.mxu0 %v665
        %812 = vmatpush2.bf16.msra.mxu0 %v664
        %813 = vmatprep.subr.bf16.mxu0 %v663
        %814 = vmatpush2.bf16.msra.mxu0 %v662
        %815 = vmatprep.subr.bf16.mxu0 %v661
        %816 = vmatpush2.bf16.msra.mxu0 %v660
        %817 = vmatprep.subr.bf16.mxu0 %v659
        %818 = vmatpush2.bf16.msra.mxu0 %v658
        %819 = vmatprep.subr.bf16.mxu0 %v657
        %820 = vmatpush2.bf16.msra.mxu0 %v656
        %821 = vmatprep.mubr.bf16.mxu0 %v403
        %822 = vmatmul.mubr.bf16.gmra.mxu0 %v402
        %v823 = vpop.f32.mrf.mxu0
        %v824 = vadd.f32 %v771, %v823
        %v825 = vpop.f32.mrf.mxu0
        %v826 = vadd.f32 %v773, %v825
        %v827 = vpop.f32.mrf.mxu0
        %v828 = vadd.f32 %v775, %v827
        %v829 = vpop.f32.mrf.mxu0
        %v830 = vadd.f32 %v777, %v829
        %831 = vmatprep.mubr.bf16.mxu0 %v407
        %832 = vmatmul.mubr.bf16.gmra.mxu0 %v406
        %v833 = vpop.f32.mrf.mxu0
        %v834 = vadd.f32 %v781, %v833
        %v835 = vpop.f32.mrf.mxu0
        %v836 = vadd.f32 %v783, %v835
        %v837 = vpop.f32.mrf.mxu0
        %v838 = vadd.f32 %v785, %v837
        %v839 = vpop.f32.mrf.mxu0
        %v840 = vadd.f32 %v787, %v839
        %841 = vdwg.mxu0
        %v842 = vmax.f32 %v824, 0.0
        %v843 = vmax.f32 %v826, 0.0
        %v844 = vmax.f32 %v828, 0.0
        %v845 = vmax.f32 %v830, 0.0
        %v846 = vmax.f32 %v834, 0.0
        %v847 = vmax.f32 %v836, 0.0
        %v848 = vmax.f32 %v838, 0.0
        %v849 = vmax.f32 %v840, 0.0
        %v850 = vpack.c.bf16 %v844, %v842
        %v851 = vpack.c.bf16 %v845, %v843
        %v852 = vpack.c.bf16 %v848, %v846
        %v853 = vpack.c.bf16 %v849, %v847
        %v854 = vld [vmem:[#allocation7] sm:$0xff]
        %v855 = vld [vmem:[#allocation7 + $0x8] sm:$0xff]
        %v856 = vld [vmem:[#allocation7 + $0x10] sm:$0xff]
        %v857 = vld [vmem:[#allocation7 + $0x18] sm:$0xff]
        %v858 = vld [vmem:[#allocation7 + $0x20] sm:$0xff]
        %v859 = vld [vmem:[#allocation7 + $0x28] sm:$0xff]
        %v860 = vld [vmem:[#allocation7 + $0x30] sm:$0xff]
        %v861 = vld [vmem:[#allocation7 + $0x38] sm:$0xff]
        %v862 = vld [vmem:[#allocation7 + $0x40] sm:$0xff]
        %v863 = vld [vmem:[#allocation7 + $0x48] sm:$0xff]
        %v864 = vld [vmem:[#allocation7 + $0x50] sm:$0xff]
        %v865 = vld [vmem:[#allocation7 + $0x58] sm:$0xff]
        %v866 = vld [vmem:[#allocation7 + $0x60] sm:$0xff]
        %v867 = vld [vmem:[#allocation7 + $0x68] sm:$0xff]
        %v868 = vld [vmem:[#allocation7 + $0x70] sm:$0xff]
        %v869 = vld [vmem:[#allocation7 + $0x78] sm:$0xff]
        %v870 = vld [vmem:[#allocation7 + $0x80] sm:$0xff]
        %v871 = vld [vmem:[#allocation7 + $0x88] sm:$0xff]
        %v872 = vld [vmem:[#allocation7 + $0x90] sm:$0xff]
        %v873 = vld [vmem:[#allocation7 + $0x98] sm:$0xff]
        %v874 = vld [vmem:[#allocation7 + $0xa0] sm:$0xff]
        %v875 = vld [vmem:[#allocation7 + $0xa8] sm:$0xff]
        %v876 = vld [vmem:[#allocation7 + $0xb0] sm:$0xff]
        %v877 = vld [vmem:[#allocation7 + $0xb8] sm:$0xff]
        %v878 = vld [vmem:[#allocation7 + $0xc0] sm:$0xff]
        %v879 = vld [vmem:[#allocation7 + $0xc8] sm:$0xff]
        %v880 = vld [vmem:[#allocation7 + $0xd0] sm:$0xff]
        %v881 = vld [vmem:[#allocation7 + $0xd8] sm:$0xff]
        %v882 = vld [vmem:[#allocation7 + $0xe0] sm:$0xff]
        %v883 = vld [vmem:[#allocation7 + $0xe8] sm:$0xff]
        %v884 = vld [vmem:[#allocation7 + $0xf0] sm:$0xff]
        %v885 = vld [vmem:[#allocation7 + $0xf8] sm:$0xff]
        %v886 = vld [vmem:[#allocation7 + $0x100] sm:$0xff]
        %v887 = vld [vmem:[#allocation7 + $0x108] sm:$0xff]
        %v888 = vld [vmem:[#allocation7 + $0x110] sm:$0xff]
        %v889 = vld [vmem:[#allocation7 + $0x118] sm:$0xff]
        %v890 = vld [vmem:[#allocation7 + $0x120] sm:$0xff]
        %v891 = vld [vmem:[#allocation7 + $0x128] sm:$0xff]
        %v892 = vld [vmem:[#allocation7 + $0x130] sm:$0xff]
        %v893 = vld [vmem:[#allocation7 + $0x138] sm:$0xff]
        %v894 = vld [vmem:[#allocation7 + $0x140] sm:$0xff]
        %v895 = vld [vmem:[#allocation7 + $0x148] sm:$0xff]
        %v896 = vld [vmem:[#allocation7 + $0x150] sm:$0xff]
        %v897 = vld [vmem:[#allocation7 + $0x158] sm:$0xff]
        %v898 = vld [vmem:[#allocation7 + $0x160] sm:$0xff]
        %v899 = vld [vmem:[#allocation7 + $0x168] sm:$0xff]
        %v900 = vld [vmem:[#allocation7 + $0x170] sm:$0xff]
        %v901 = vld [vmem:[#allocation7 + $0x178] sm:$0xff]
        %v902 = vld [vmem:[#allocation7 + $0x180] sm:$0xff]
        %v903 = vld [vmem:[#allocation7 + $0x188] sm:$0xff]
        %v904 = vld [vmem:[#allocation7 + $0x190] sm:$0xff]
        %v905 = vld [vmem:[#allocation7 + $0x198] sm:$0xff]
        %v906 = vld [vmem:[#allocation7 + $0x1a0] sm:$0xff]
        %v907 = vld [vmem:[#allocation7 + $0x1a8] sm:$0xff]
        %v908 = vld [vmem:[#allocation7 + $0x1b0] sm:$0xff]
        %v909 = vld [vmem:[#allocation7 + $0x1b8] sm:$0xff]
        %v910 = vld [vmem:[#allocation7 + $0x1c0] sm:$0xff]
        %v911 = vld [vmem:[#allocation7 + $0x1c8] sm:$0xff]
        %v912 = vld [vmem:[#allocation7 + $0x1d0] sm:$0xff]
        %v913 = vld [vmem:[#allocation7 + $0x1d8] sm:$0xff]
        %v914 = vld [vmem:[#allocation7 + $0x1e0] sm:$0xff]
        %v915 = vld [vmem:[#allocation7 + $0x1e8] sm:$0xff]
        %v916 = vld [vmem:[#allocation7 + $0x1f0] sm:$0xff]
        %v917 = vld [vmem:[#allocation7 + $0x1f8] sm:$0xff]
        %v918 = vld [vmem:[%s4] sm:$0xf]
        %v920 = vlaneseq
        %v921 = vshrl.u32 %v920, 7
        %v922 = vsub.s32 0, %v921
        %v923 = vrot.slane %v918, %v922
        %v924 = vlaneseq
        %v925 = vshrl.u32 %v924, 7
        %v926 = vsub.s32 1, %v925
        %v927 = vrot.slane %v918, %v926
        %v928 = vlaneseq
        %v929 = vshrl.u32 %v928, 7
        %v930 = vsub.s32 2, %v929
        %v931 = vrot.slane %v918, %v930
        %v932 = vlaneseq
        %v933 = vshrl.u32 %v932, 7
        %v934 = vsub.s32 3, %v933
        %v935 = vrot.slane %v918, %v934
        %v1004 = vunpack.c.l.b16 %v854
        %v1005 = vunpack.c.h.b16 %v854
        %v1006 = vunpack.c.l.b16 %v855
        %v1007 = vunpack.c.h.b16 %v855
        %v1008 = vunpack.c.l.b16 %v856
        %v1009 = vunpack.c.h.b16 %v856
        %v1010 = vunpack.c.l.b16 %v857
        %v1011 = vunpack.c.h.b16 %v857
        %v1012 = vunpack.c.l.b16 %v858
        %v1013 = vunpack.c.h.b16 %v858
        %v1014 = vunpack.c.l.b16 %v859
        %v1015 = vunpack.c.h.b16 %v859
        %v1016 = vunpack.c.l.b16 %v860
        %v1017 = vunpack.c.h.b16 %v860
        %v1018 = vunpack.c.l.b16 %v861
        %v1019 = vunpack.c.h.b16 %v861
        %v1020 = vunpack.c.l.b16 %v862
        %v1021 = vunpack.c.h.b16 %v862
        %v1022 = vunpack.c.l.b16 %v863
        %v1023 = vunpack.c.h.b16 %v863
        %v1024 = vunpack.c.l.b16 %v864
        %v1025 = vunpack.c.h.b16 %v864
        %v1026 = vunpack.c.l.b16 %v865
        %v1027 = vunpack.c.h.b16 %v865
        %v1028 = vunpack.c.l.b16 %v866
        %v1029 = vunpack.c.h.b16 %v866
        %v1030 = vunpack.c.l.b16 %v867
        %v1031 = vunpack.c.h.b16 %v867
        %v1032 = vunpack.c.l.b16 %v868
        %v1033 = vunpack.c.h.b16 %v868
        %v1034 = vunpack.c.l.b16 %v869
        %v1035 = vunpack.c.h.b16 %v869
        %v1036 = vunpack.c.l.b16 %v870
        %v1037 = vunpack.c.h.b16 %v870
        %v1038 = vunpack.c.l.b16 %v871
        %v1039 = vunpack.c.h.b16 %v871
        %v1040 = vunpack.c.l.b16 %v872
        %v1041 = vunpack.c.h.b16 %v872
        %v1042 = vunpack.c.l.b16 %v873
        %v1043 = vunpack.c.h.b16 %v873
        %v1044 = vunpack.c.l.b16 %v874
        %v1045 = vunpack.c.h.b16 %v874
        %v1046 = vunpack.c.l.b16 %v875
        %v1047 = vunpack.c.h.b16 %v875
        %v1048 = vunpack.c.l.b16 %v876
        %v1049 = vunpack.c.h.b16 %v876
        %v1050 = vunpack.c.l.b16 %v877
        %v1051 = vunpack.c.h.b16 %v877
        %v1052 = vunpack.c.l.b16 %v878
        %v1053 = vunpack.c.h.b16 %v878
        %v1054 = vunpack.c.l.b16 %v879
        %v1055 = vunpack.c.h.b16 %v879
        %v1056 = vunpack.c.l.b16 %v880
        %v1057 = vunpack.c.h.b16 %v880
        %v1058 = vunpack.c.l.b16 %v881
        %v1059 = vunpack.c.h.b16 %v881
        %v1060 = vunpack.c.l.b16 %v882
        %v1061 = vunpack.c.h.b16 %v882
        %v1062 = vunpack.c.l.b16 %v883
        %v1063 = vunpack.c.h.b16 %v883
        %v1064 = vunpack.c.l.b16 %v884
        %v1065 = vunpack.c.h.b16 %v884
        %v1066 = vunpack.c.l.b16 %v885
        %v1067 = vunpack.c.h.b16 %v885
        %v1068 = vunpack.c.l.b16 %v886
        %v1069 = vunpack.c.h.b16 %v886
        %v1070 = vunpack.c.l.b16 %v887
        %v1071 = vunpack.c.h.b16 %v887
        %v1072 = vunpack.c.l.b16 %v888
        %v1073 = vunpack.c.h.b16 %v888
        %v1074 = vunpack.c.l.b16 %v889
        %v1075 = vunpack.c.h.b16 %v889
        %v1076 = vunpack.c.l.b16 %v890
        %v1077 = vunpack.c.h.b16 %v890
        %v1078 = vunpack.c.l.b16 %v891
        %v1079 = vunpack.c.h.b16 %v891
        %v1080 = vunpack.c.l.b16 %v892
        %v1081 = vunpack.c.h.b16 %v892
        %v1082 = vunpack.c.l.b16 %v893
        %v1083 = vunpack.c.h.b16 %v893
        %v1084 = vunpack.c.l.b16 %v894
        %v1085 = vunpack.c.h.b16 %v894
        %v1086 = vunpack.c.l.b16 %v895
        %v1087 = vunpack.c.h.b16 %v895
        %v1088 = vunpack.c.l.b16 %v896
        %v1089 = vunpack.c.h.b16 %v896
        %v1090 = vunpack.c.l.b16 %v897
        %v1091 = vunpack.c.h.b16 %v897
        %v1092 = vunpack.c.l.b16 %v898
        %v1093 = vunpack.c.h.b16 %v898
        %v1094 = vunpack.c.l.b16 %v899
        %v1095 = vunpack.c.h.b16 %v899
        %v1096 = vunpack.c.l.b16 %v900
        %v1097 = vunpack.c.h.b16 %v900
        %v1098 = vunpack.c.l.b16 %v901
        %v1099 = vunpack.c.h.b16 %v901
        %v1100 = vunpack.c.l.b16 %v902
        %v1101 = vunpack.c.h.b16 %v902
        %v1102 = vunpack.c.l.b16 %v903
        %v1103 = vunpack.c.h.b16 %v903
        %v1104 = vunpack.c.l.b16 %v904
        %v1105 = vunpack.c.h.b16 %v904
        %v1106 = vunpack.c.l.b16 %v905
        %v1107 = vunpack.c.h.b16 %v905
        %v1108 = vunpack.c.l.b16 %v906
        %v1109 = vunpack.c.h.b16 %v906
        %v1110 = vunpack.c.l.b16 %v907
        %v1111 = vunpack.c.h.b16 %v907
        %v1112 = vunpack.c.l.b16 %v908
        %v1113 = vunpack.c.h.b16 %v908
        %v1114 = vunpack.c.l.b16 %v909
        %v1115 = vunpack.c.h.b16 %v909
        %v1116 = vunpack.c.l.b16 %v910
        %v1117 = vunpack.c.h.b16 %v910
        %v1118 = vunpack.c.l.b16 %v911
        %v1119 = vunpack.c.h.b16 %v911
        %v1120 = vunpack.c.l.b16 %v912
        %v1121 = vunpack.c.h.b16 %v912
        %v1122 = vunpack.c.l.b16 %v913
        %v1123 = vunpack.c.h.b16 %v913
        %v1124 = vunpack.c.l.b16 %v914
        %v1125 = vunpack.c.h.b16 %v914
        %v1126 = vunpack.c.l.b16 %v915
        %v1127 = vunpack.c.h.b16 %v915
        %v1128 = vunpack.c.l.b16 %v916
        %v1129 = vunpack.c.h.b16 %v916
        %v1130 = vunpack.c.l.b16 %v917
        %v1131 = vunpack.c.h.b16 %v917
        %v1132 = vpack.c.b16 %v1008, %v1004
        %v1133 = vpack.c.b16 %v1009, %v1005
        %v1134 = vpack.c.b16 %v1010, %v1006
        %v1135 = vpack.c.b16 %v1011, %v1007
        %v1136 = vpack.c.b16 %v1016, %v1012
        %v1137 = vpack.c.b16 %v1017, %v1013
        %v1138 = vpack.c.b16 %v1018, %v1014
        %v1139 = vpack.c.b16 %v1019, %v1015
        %v1140 = vpack.c.b16 %v1024, %v1020
        %v1141 = vpack.c.b16 %v1025, %v1021
        %v1142 = vpack.c.b16 %v1026, %v1022
        %v1143 = vpack.c.b16 %v1027, %v1023
        %v1144 = vpack.c.b16 %v1032, %v1028
        %v1145 = vpack.c.b16 %v1033, %v1029
        %v1146 = vpack.c.b16 %v1034, %v1030
        %v1147 = vpack.c.b16 %v1035, %v1031
        %v1148 = vpack.c.b16 %v1040, %v1036
        %v1149 = vpack.c.b16 %v1041, %v1037
        %v1150 = vpack.c.b16 %v1042, %v1038
        %v1151 = vpack.c.b16 %v1043, %v1039
        %v1152 = vpack.c.b16 %v1048, %v1044
        %v1153 = vpack.c.b16 %v1049, %v1045
        %v1154 = vpack.c.b16 %v1050, %v1046
        %v1155 = vpack.c.b16 %v1051, %v1047
        %v1156 = vpack.c.b16 %v1056, %v1052
        %v1157 = vpack.c.b16 %v1057, %v1053
        %v1158 = vpack.c.b16 %v1058, %v1054
        %v1159 = vpack.c.b16 %v1059, %v1055
        %v1160 = vpack.c.b16 %v1064, %v1060
        %v1161 = vpack.c.b16 %v1065, %v1061
        %v1162 = vpack.c.b16 %v1066, %v1062
        %v1163 = vpack.c.b16 %v1067, %v1063
        %v1164 = vpack.c.b16 %v1072, %v1068
        %v1165 = vpack.c.b16 %v1073, %v1069
        %v1166 = vpack.c.b16 %v1074, %v1070
        %v1167 = vpack.c.b16 %v1075, %v1071
        %v1168 = vpack.c.b16 %v1080, %v1076
        %v1169 = vpack.c.b16 %v1081, %v1077
        %v1170 = vpack.c.b16 %v1082, %v1078
        %v1171 = vpack.c.b16 %v1083, %v1079
        %v1172 = vpack.c.b16 %v1088, %v1084
        %v1173 = vpack.c.b16 %v1089, %v1085
        %v1174 = vpack.c.b16 %v1090, %v1086
        %v1175 = vpack.c.b16 %v1091, %v1087
        %v1176 = vpack.c.b16 %v1096, %v1092
        %v1177 = vpack.c.b16 %v1097, %v1093
        %v1178 = vpack.c.b16 %v1098, %v1094
        %v1179 = vpack.c.b16 %v1099, %v1095
        %v1180 = vpack.c.b16 %v1104, %v1100
        %v1181 = vpack.c.b16 %v1105, %v1101
        %v1182 = vpack.c.b16 %v1106, %v1102
        %v1183 = vpack.c.b16 %v1107, %v1103
        %v1184 = vpack.c.b16 %v1112, %v1108
        %v1185 = vpack.c.b16 %v1113, %v1109
        %v1186 = vpack.c.b16 %v1114, %v1110
        %v1187 = vpack.c.b16 %v1115, %v1111
        %v1188 = vpack.c.b16 %v1120, %v1116
        %v1189 = vpack.c.b16 %v1121, %v1117
        %v1190 = vpack.c.b16 %v1122, %v1118
        %v1191 = vpack.c.b16 %v1123, %v1119
        %v1192 = vpack.c.b16 %v1128, %v1124
        %v1193 = vpack.c.b16 %v1129, %v1125
        %v1194 = vpack.c.b16 %v1130, %v1126
        %v1195 = vpack.c.b16 %v1131, %v1127
        %1260 = vmatprep.subr.bf16.mxu0 %v1161
        %1261 = vmatpush1.bf16.msra.mxu0 %v1160
        %1262 = vmatprep.subr.bf16.mxu0 %v1157
        %1263 = vmatpush1.bf16.msra.mxu0 %v1156
        %1264 = vmatprep.subr.bf16.mxu0 %v1153
        %1265 = vmatpush1.bf16.msra.mxu0 %v1152
        %1266 = vmatprep.subr.bf16.mxu0 %v1149
        %1267 = vmatpush1.bf16.msra.mxu0 %v1148
        %1268 = vmatprep.subr.bf16.mxu0 %v1145
        %1269 = vmatpush1.bf16.msra.mxu0 %v1144
        %1270 = vmatprep.subr.bf16.mxu0 %v1141
        %1271 = vmatpush1.bf16.msra.mxu0 %v1140
        %1272 = vmatprep.subr.bf16.mxu0 %v1137
        %1273 = vmatpush1.bf16.msra.mxu0 %v1136
        %1274 = vmatprep.subr.bf16.mxu0 %v1133
        %1275 = vmatpush1.bf16.msra.mxu0 %v1132
        %1276 = vmatprep.subr.bf16.mxu0 %v1193
        %1277 = vmatpush2.bf16.msra.mxu0 %v1192
        %1278 = vmatprep.subr.bf16.mxu0 %v1189
        %1279 = vmatpush2.bf16.msra.mxu0 %v1188
        %1280 = vmatprep.subr.bf16.mxu0 %v1185
        %1281 = vmatpush2.bf16.msra.mxu0 %v1184
        %1282 = vmatprep.subr.bf16.mxu0 %v1181
        %1283 = vmatpush2.bf16.msra.mxu0 %v1180
        %1284 = vmatprep.subr.bf16.mxu0 %v1177
        %1285 = vmatpush2.bf16.msra.mxu0 %v1176
        %1286 = vmatprep.subr.bf16.mxu0 %v1173
        %1287 = vmatpush2.bf16.msra.mxu0 %v1172
        %1288 = vmatprep.subr.bf16.mxu0 %v1169
        %1289 = vmatpush2.bf16.msra.mxu0 %v1168
        %1290 = vmatprep.subr.bf16.mxu0 %v1165
        %1291 = vmatpush2.bf16.msra.mxu0 %v1164
        %1292 = vmatprep.mubr.bf16.mxu0 %v851
        %1293 = vmatmul.mubr.bf16.gmra.mxu0 %v850
        %v1294 = vpop.f32.mrf.mxu0
        %v1295 = vadd.f32 %v923, %v1294
        %v1296 = vpop.f32.mrf.mxu0
        %v1297 = vadd.f32 %v927, %v1296
        %v1298 = vpop.f32.mrf.mxu0
        %v1299 = vadd.f32 %v923, %v1298
        %v1300 = vpop.f32.mrf.mxu0
        %v1301 = vadd.f32 %v927, %v1300
        %1302 = vmatprep.mubr.bf16.mxu0 %v853
        %1303 = vmatmul.mubr.bf16.gmra.mxu0 %v852
        %v1304 = vpop.f32.mrf.mxu0
        %v1305 = vadd.f32 %v923, %v1304
        %v1306 = vpop.f32.mrf.mxu0
        %v1307 = vadd.f32 %v927, %v1306
        %v1308 = vpop.f32.mrf.mxu0
        %v1309 = vadd.f32 %v923, %v1308
        %v1310 = vpop.f32.mrf.mxu0
        %v1311 = vadd.f32 %v927, %v1310
        %1312 = vdwg.mxu0
        %1313 = vmatprep.subr.bf16.mxu0 %v1163
        %1314 = vmatpush1.bf16.msra.mxu0 %v1162
        %1315 = vmatprep.subr.bf16.mxu0 %v1159
        %1316 = vmatpush1.bf16.msra.mxu0 %v1158
        %1317 = vmatprep.subr.bf16.mxu0 %v1155
        %1318 = vmatpush1.bf16.msra.mxu0 %v1154
        %1319 = vmatprep.subr.bf16.mxu0 %v1151
        %1320 = vmatpush1.bf16.msra.mxu0 %v1150
        %1321 = vmatprep.subr.bf16.mxu0 %v1147
        %1322 = vmatpush1.bf16.msra.mxu0 %v1146
        %1323 = vmatprep.subr.bf16.mxu0 %v1143
        %1324 = vmatpush1.bf16.msra.mxu0 %v1142
        %1325 = vmatprep.subr.bf16.mxu0 %v1139
        %1326 = vmatpush1.bf16.msra.mxu0 %v1138
        %1327 = vmatprep.subr.bf16.mxu0 %v1135
        %1328 = vmatpush1.bf16.msra.mxu0 %v1134
        %1329 = vmatprep.subr.bf16.mxu0 %v1195
        %1330 = vmatpush2.bf16.msra.mxu0 %v1194
        %1331 = vmatprep.subr.bf16.mxu0 %v1191
        %1332 = vmatpush2.bf16.msra.mxu0 %v1190
        %1333 = vmatprep.subr.bf16.mxu0 %v1187
        %1334 = vmatpush2.bf16.msra.mxu0 %v1186
        %1335 = vmatprep.subr.bf16.mxu0 %v1183
        %1336 = vmatpush2.bf16.msra.mxu0 %v1182
        %1337 = vmatprep.subr.bf16.mxu0 %v1179
        %1338 = vmatpush2.bf16.msra.mxu0 %v1178
        %1339 = vmatprep.subr.bf16.mxu0 %v1175
        %1340 = vmatpush2.bf16.msra.mxu0 %v1174
        %1341 = vmatprep.subr.bf16.mxu0 %v1171
        %1342 = vmatpush2.bf16.msra.mxu0 %v1170
        %1343 = vmatprep.subr.bf16.mxu0 %v1167
        %1344 = vmatpush2.bf16.msra.mxu0 %v1166
        %1345 = vmatprep.mubr.bf16.mxu0 %v851
        %1346 = vmatmul.mubr.bf16.gmra.mxu0 %v850
        %v1347 = vpop.f32.mrf.mxu0
        %v1348 = vadd.f32 %v931, %v1347
        %v1349 = vpop.f32.mrf.mxu0
        %v1350 = vadd.f32 %v935, %v1349
        %v1351 = vpop.f32.mrf.mxu0
        %v1352 = vadd.f32 %v931, %v1351
        %v1353 = vpop.f32.mrf.mxu0
        %v1354 = vadd.f32 %v935, %v1353
        %1355 = vmatprep.mubr.bf16.mxu0 %v853
        %1356 = vmatmul.mubr.bf16.gmra.mxu0 %v852
        %v1357 = vpop.f32.mrf.mxu0
        %v1358 = vadd.f32 %v931, %v1357
        %v1359 = vpop.f32.mrf.mxu0
        %v1360 = vadd.f32 %v935, %v1359
        %v1361 = vpop.f32.mrf.mxu0
        %v1362 = vadd.f32 %v931, %v1361
        %v1363 = vpop.f32.mrf.mxu0
        %v1364 = vadd.f32 %v935, %v1363
        %1365 = vdwg.mxu0
        %v1366 = vpack.c.bf16 %v1299, %v1295
        %v1367 = vpack.c.bf16 %v1301, %v1297
        %v1368 = vpack.c.bf16 %v1352, %v1348
        %v1369 = vpack.c.bf16 %v1354, %v1350
        %v1370 = vpack.c.bf16 %v1309, %v1305
        %v1371 = vpack.c.bf16 %v1311, %v1307
        %v1372 = vpack.c.bf16 %v1362, %v1358
        %v1373 = vpack.c.bf16 %v1364, %v1360
        %v1382 = vunpack.c.l.b16 %v1366
        %v1383 = vunpack.c.l.b16 %v1367
        %v1384 = vunpack.c.l.b16 %v1368
        %v1385 = vunpack.c.l.b16 %v1369
        %v1386 = vunpack.c.h.b16 %v1366
        %v1387 = vunpack.c.h.b16 %v1367
        %v1388 = vunpack.c.h.b16 %v1368
        %v1389 = vunpack.c.h.b16 %v1369
        %v1390 = vunpack.c.l.b16 %v1370
        %v1391 = vunpack.c.l.b16 %v1371
        %v1392 = vunpack.c.l.b16 %v1372
        %v1393 = vunpack.c.l.b16 %v1373
        %v1394 = vunpack.c.h.b16 %v1370
        %v1395 = vunpack.c.h.b16 %v1371
        %v1396 = vunpack.c.h.b16 %v1372
        %v1397 = vunpack.c.h.b16 %v1373
        %v1398 = vpack.c.b16 %v1383, %v1382
        %v1399 = vpack.c.b16 %v1385, %v1384
        %v1400 = vpack.c.b16 %v1387, %v1386
        %v1401 = vpack.c.b16 %v1389, %v1388
        %v1402 = vpack.c.b16 %v1391, %v1390
        %v1403 = vpack.c.b16 %v1393, %v1392
        %v1404 = vpack.c.b16 %v1395, %v1394
        %v1405 = vpack.c.b16 %v1397, %v1396
        %1414 = vst [vmem:[%s279] sm:$0xff] %v1398
        %1415 = vst [vmem:[%s279 + $0x8] sm:$0xff] %v1399
        %1416 = vst [vmem:[%s279 + $0x10] sm:$0xff] %v1400
        %1417 = vst [vmem:[%s279 + $0x18] sm:$0xff] %v1401
        %1418 = vst [vmem:[%s279 + $0x20] sm:$0xff] %v1402
        %1419 = vst [vmem:[%s279 + $0x28] sm:$0xff] %v1403
        %1420 = vst [vmem:[%s279 + $0x30] sm:$0xff] %v1404
        %1421 = vst [vmem:[%s279 + $0x38] sm:$0xff] %v1405
        %s1422 = sand.u32 %s141, 1
        %s1423 = scalar_lea.sflag [#allocation4], %s1422
        %s1424 = sand.u32 %s141, 1
        %s1425 = smul.addr %s1424, 64
        %s1426 = scalar_lea.vmem [#allocation8], %s1425
        // Predicated region
        $region53: #{mlp_forward.1} parent=39 // pred_check
          %p1427 = pneg %p151
        $region54: #{mlp_forward.1} parent=39 // pred_check_branch
          %1429 = sbr.rel (%p1427) target = $region56
        $region55: #{mlp_forward.1} parent=39 // pred_region
          %s1430 = smul.u32 4, %s23
          %s1431 = ssub.s32 6, %s1430
          %p1432 = scmp.lt.s32.totalorder %s1431, 4
          %s1433 = scalar_select %p1432, %s1431, 4
          %s1434 = smul.u32 64, %s1433
          %s1435 = smul.u32 %s1434, 4
          %s1437 = ssub.s32 1024, %s1435
          %1438 = vsyncadd %s1423, %s1437
          %p1439 = scmp.ne.s32.totalorder 0, %s1435
          %s1440 = smul.addr %s1430, 4
          %s1441 = smul.addr %s1440, 64
          %s1442 = scalar_lea.hbm %s5, %s1441
          %s1443 = smul.u32 16, %s1433
          %s1444 = sshll.u32 %s1426, 4
          %s1445 = int_to_ptr.vmem [resolvable:$true] %s1444
          %s1446 = sshll.u32 %s1443, 4
          %1450 = dma.vmem_to_hbm [thread:$0]  (%p1439), %s1445, %s1446, %s1442, %s1423, 256, 256, 16
        $region56: #{mlp_forward.1} parent=39 // pred_fallthru
          _
      $region40: #{mlp_forward.1} parent=5 // pred_fallthru
        _
      %p1451 = scmp.le.s32.totalorder 2, %s18
      // Predicated region
      $region57: #{mlp_forward.1} parent=5 // pred_check
        %p1452 = pneg %p1451
      $region58: #{mlp_forward.1} parent=5 // pred_check_branch
        %1454 = sbr.rel (%p1452) target = $region60
      $region59: #{mlp_forward.1} parent=5 // pred_region
        %s1455 = ssub.s32 %s18, 2
        // Predicated region
        $region61: #{mlp_forward.1} parent=59 // pred_check
          %p1456 = pneg %p157
        $region62: #{mlp_forward.1} parent=59 // pred_check_branch
          %1458 = sbr.rel (%p1456) target = $region64
        $region63: #{mlp_forward.1} parent=59 // pred_region
          %s1459 = sand.u32 %s142, 1
          %s1460 = scalar_lea.sflag [#allocation4], %s1459
          %s1461 = sand.u32 %s142, 1
          %s1462 = smul.addr %s1461, 64
          %s1463 = scalar_lea.vmem [#allocation8], %s1462
          %1464 = dma.done %s1460, 1024
        $region64: #{mlp_forward.1} parent=59 // pred_fallthru
          _
      $region60: #{mlp_forward.1} parent=5 // pred_fallthru
        _
    $region6: #{mlp_forward.1} parent=1 // loop_footer
      %s22 = sadd.s32 1, %s18
    $region7: #{mlp_forward.1} parent=1 // loop_footer_branch
      %17 = sbr.rel target = $region3
    $region8: #{mlp_forward.1} parent=1 // loop_exit
      _
    %1465 = vsyncpa [#allocation3], 1
    %s1466 = scalar_lea.sflag [#allocation3], 1
    %1467 = vsyncpa %s1466, 1
    %1468 = vsyncpa [#allocation6], 1
    %1469 = vsyncpa [#allocation4], 1
    %s1470 = scalar_lea.sflag [#allocation4], 1
    %1471 = vsyncpa %s1470, 1

</llo_original>
